<compile_context>
chip_gen: v5e
topology: v5e:2x2
jax: 0.10.0
libtpu: 0.0.40
codegen_flags: <defaults>
</compile_context>

<pallas_src>
import functools
import math

import jax
import jax.numpy as jnp
from jax import lax
from jax.experimental import pallas as pl
from jax.experimental.pallas import tpu as pltpu


def spiking_block_kernel(x_ref, w_ref, shift_ref, leak_ref, thr_ref,
                         pv_ref, pz_ref, v_ref, z_ref,
                         patch_sc, conv_sc, *,
                         kh, kw, h_out, w_out, wp, nb, hard_reset):
    """One grid step = `nb` images.

    x_ref:     (nb, C_in, L)        flat, padded images (L = (Hp+1)*Wp)
    w_ref:     (C_out, KH*KW*C_in)  conv weights with BN scale folded in
    shift_ref: (C_out, 1)           folded BN shift
    leak_ref:  (C_out, 1)           sigmoid(leak_proxy)
    thr_ref:   (C_out, 1)           clamp_min(thresh, 0.01)
    pv_ref/pz_ref: (nb, C_out, H_out*W_out)   previous LIF state
    v_ref/z_ref:   (nb, C_out, H_out*W_out)   new membrane potential / spikes
    patch_sc:  (KH*KW*C_in, H_out*Wp) VMEM scratch (im2col patch)
    conv_sc:   (C_out, H_out*W_out)   VMEM scratch (valid conv columns)
    """
    c_in = x_ref.shape[1]
    c_out = w_ref.shape[0]
    m = h_out * wp                                 # flat (padded-width) output extent

    # Per-channel params: hoisted out of the image loop.
    w_mat = w_ref[...].astype(jnp.float32)         # (C_out, KH*KW*C_in)
    shift = shift_ref[...]                         # (C_out, 1)
    leak = leak_ref[...]                           # (C_out, 1)
    thr = thr_ref[...]                             # (C_out, 1)

    for b in range(nb):                            # static unroll; nb is small
        xb = x_ref[b].astype(jnp.float32)          # (C_in, L)

        # im2col: rows = taps x channels, lanes = flattened (padded-width) output positions.
        # Each tap is a *contiguous* lane-offset slice of the flat image -> no strided
        # window relayout per tap.
        for i in range(kh):
            for j in range(kw):
                t = i * kw + j
                s = i * wp + j
                patch_sc[t * c_in:(t + 1) * c_in, :] = lax.slice(
                    xb, (0, s), (c_in, s + m))

        # One MXU matmul for all taps / input channels (K = KH*KW*C_in).
        acc = jnp.dot(w_mat, patch_sc[...],
                      preferred_element_type=jnp.float32)      # (C_out, H_out*Wp)

        # Drop the padded-width wrap columns -> lane-dense (C_out, H_out*W_out).
        for h in range(h_out):
            conv_sc[:, h * w_out:(h + 1) * w_out] = lax.slice(
                acc, (0, h * wp), (c_out, h * wp + w_out))
        v1 = conv_sc[...] + shift                  # BN shift (scale already folded into w_mat)

        # LIF neuron update (dense (C_out, H_out*W_out) elementwise on the VPU).
        pv = pv_ref[b].astype(jnp.float32)
        pz = pz_ref[b].astype(jnp.float32)
        if hard_reset:
            new_v = pv * leak * (1.0 - pz) + v1
        else:
            new_v = pv * leak + v1 - pz * thr
        new_z = (new_v > thr).astype(jnp.float32)  # arctanspike forward = Heaviside

        v_ref[b] = new_v.astype(v_ref.dtype)
        z_ref[b] = new_z.astype(z_ref.dtype)


def spiking_basic_block_forward(x, weight, bn_scale, bn_shift, leak_proxy, thresh,
                                prev_v, prev_z, *, stride, padding,
                                hard_reset=True, images_per_block=1):
    """Pallas implementation of SpikingBasicBlock.forward (eval-mode BN)."""
    N, C_in, H, W = x.shape
    C_out, _, KH, KW = weight.shape
    assert stride == 1, "TODO(synk): only stride==1 is implemented"
    H_out = H + 2 * padding - KH + 1
    W_out = W + 2 * padding - KW + 1
    Hp, Wp = H + 2 * padding, W + 2 * padding
    HW = H_out * W_out
    nb = images_per_block
    assert N % nb == 0, "images_per_block must divide the batch"

    # Flat padded input: pad H by (p, p+1) -- the extra all-zero bottom row keeps the last
    # tap's lane-shifted slice in bounds -- and W by (p, p); then flatten (H, W).
    L = (Hp + 1) * Wp
    x_flat = jnp.pad(
        x, ((0, 0), (0, 0), (padding, padding + 1), (padding, padding))
    ).reshape(N, C_in, L)

    # Weights: (C_out, C_in, KH, KW) -> (C_out, KH*KW*C_in), BN scale folded in.
    w_mat = (jnp.transpose(weight, (0, 2, 3, 1)).reshape(C_out, KH * KW * C_in)
             * bn_scale.reshape(C_out, 1)).astype(jnp.float32)
    shift = bn_shift.reshape(C_out, 1).astype(jnp.float32)
    leak = jax.nn.sigmoid(leak_proxy.astype(jnp.float32)).reshape(C_out, 1)
    thr = jnp.maximum(thresh.astype(jnp.float32), 0.01).reshape(C_out, 1)

    # Previous LIF state, spatially flattened (free: contiguous NCHW reshape).
    pv_flat = prev_v.reshape(N, C_out, HW)
    pz_flat = prev_z.reshape(N, C_out, HW)

    kernel = functools.partial(spiking_block_kernel, kh=KH, kw=KW,
                               h_out=H_out, w_out=W_out, wp=Wp, nb=nb,
                               hard_reset=hard_reset)

    state_spec = pl.BlockSpec((nb, C_out, HW), lambda n: (n, 0, 0))
    chan_spec = pl.BlockSpec((C_out, 1), lambda n: (0, 0))

    new_v, new_z = pl.pallas_call(
        kernel,
        out_shape=(jax.ShapeDtypeStruct((N, C_out, HW), x.dtype),
                   jax.ShapeDtypeStruct((N, C_out, HW), x.dtype)),
        grid_spec=pltpu.PrefetchScalarGridSpec(
            num_scalar_prefetch=0,
            grid=(N // nb,),
            in_specs=[
                pl.BlockSpec((nb, C_in, L), lambda n: (n, 0, 0)),
                pl.BlockSpec((C_out, KH * KW * C_in), lambda n: (0, 0)),
                chan_spec,            # BN shift
                chan_spec,            # leak
                chan_spec,            # threshold
                state_spec,           # prev_v
                state_spec,           # prev_z
            ],
            out_specs=(state_spec, state_spec),
            scratch_shapes=[
                pltpu.VMEM((KH * KW * C_in, H_out * Wp), jnp.float32),
                pltpu.VMEM((C_out, HW), jnp.float32),
            ]),
        compiler_params=pltpu.CompilerParams(
            dimension_semantics=("parallel",),
            vmem_limit_bytes=32 * 1024 * 1024),
    )(x_flat, w_mat, shift, leak, thr, pv_flat, pz_flat)

    return (new_v.reshape(N, C_out, H_out, W_out),
            new_z.reshape(N, C_out, H_out, W_out))


if __name__ == "__main__":
    # Module config: SpikingBasicBlock(4, 8, 3, 1, 1, norm='bn-all-ts', neuron_options={...}).
    N, C_in, C_out = 2, 4, 8
    H = W = 16
    KH = KW = 3
    stride, padding = 1, 1
    eps = 1e-5

    key = jax.random.PRNGKey(0)
    (k_x, k_w, k_g, k_b, k_m, k_v,
     k_leak, k_thr, k_pv, k_pz) = jax.random.split(key, 10)

    # Conv weight: nn.init.uniform_(-sqrt(1/C_in), sqrt(1/C_in)), bias=False.
    w_scale = math.sqrt(1.0 / C_in)
    weight = jax.random.uniform(k_w, (C_out, C_in, KH, KW),
                                jnp.float32, -w_scale, w_scale)

    # BatchNorm parameters / running statistics (eval-mode), folded to scale/shift.
    gamma = jax.random.uniform(k_g, (C_out,), jnp.float32, 0.5, 1.5)
    beta = jax.random.uniform(k_b, (C_out,), jnp.float32, -0.5, 0.5)
    running_mean = jax.random.uniform(k_m, (C_out,), jnp.float32, -0.1, 0.1)
    running_var = jax.random.uniform(k_v, (C_out,), jnp.float32, 0.5, 1.5)
    bn_scale = gamma / jnp.sqrt(running_var + eps)
    bn_shift = beta - running_mean * bn_scale

    # LIF parameters (param_dim=[C_out, 1, 1]).
    leak_proxy = jax.random.normal(k_leak, (C_out, 1, 1), jnp.float32)
    thresh = jax.random.normal(k_thr, (C_out, 1, 1), jnp.float32)

    # Input and previous LIF state (NCHW, PyTorch convention).
    x = jax.random.normal(k_x, (N, C_in, H, W), jnp.float32)
    prev_v = jax.random.normal(k_pv, (N, C_out, H, W), jnp.float32)
    prev_z = (jax.random.uniform(k_pz, (N, C_out, H, W)) < 0.5).astype(jnp.float32)

    new_v, new_z = spiking_basic_block_forward(
        x, weight, bn_scale, bn_shift, leak_proxy, thresh, prev_v, prev_z,
        stride=stride, padding=padding, hard_reset=True, images_per_block=1)
    new_v, new_z = jax.block_until_ready((new_v, new_z))

    # Pure-JAX reference (same eval-mode BN / LIF-forward semantics).
    conv_ref = lax.conv_general_dilated(
        x, weight, window_strides=(stride, stride),
        padding=[(padding, padding), (padding, padding)],
        dimension_numbers=("NCHW", "OIHW", "NCHW"))
    v1 = conv_ref * bn_scale[None, :, None, None] + bn_shift[None, :, None, None]
    leak_c = jax.nn.sigmoid(leak_proxy)            # (C_out,1,1) broadcasts as (1,C_out,1,1)
    thr_c = jnp.maximum(thresh, 0.01)
    ref_v = prev_v * leak_c * (1.0 - prev_z) + v1
    ref_z = (ref_v > thr_c).astype(jnp.float32)

    assert new_v.shape == (N, C_out, H, W) and new_z.shape == (N, C_out, H, W)
    assert jnp.allclose(new_v, ref_v, atol=1e-4, rtol=1e-4), (
        float(jnp.max(jnp.abs(new_v - ref_v))))
    # Spikes may only differ where the membrane potential sits (numerically) on the threshold.
    near_thr = jnp.abs(ref_v - thr_c) < 1e-3
    assert bool(jnp.all((new_z == ref_z) | near_thr))

    print("KERNEL_OK")
</pallas_src>

<mosaic_0001>
module attributes {stable_mosaic.version = 11 : i64} {
  func.func @spiking_block_kernel(%arg0: i32, %arg1: memref<1x4x342xf32, #tpu.memory_space<vmem>>, %arg2: memref<8x36xf32, #tpu.memory_space<vmem>>, %arg3: memref<8x1xf32, #tpu.memory_space<vmem>>, %arg4: memref<8x1xf32, #tpu.memory_space<vmem>>, %arg5: memref<8x1xf32, #tpu.memory_space<vmem>>, %arg6: memref<1x8x256xf32, #tpu.memory_space<vmem>>, %arg7: memref<1x8x256xf32, #tpu.memory_space<vmem>>, %arg8: memref<1x8x256xf32, #tpu.memory_space<vmem>>, %arg9: memref<1x8x256xf32, #tpu.memory_space<vmem>>, %arg10: memref<36x288xf32, #tpu.memory_space<vmem>>, %arg11: memref<8x256xf32, #tpu.memory_space<vmem>>) attributes {dimension_semantics = [#tpu.dimension_semantics<parallel>], iteration_bounds = array<i64: 2>, scalar_prefetch = 0 : i64, scratch_operands = 2 : i64, tpu.core_type = #tpu.core_type<tc>, window_params = [{transform_indices = @transform_0, window_bounds = array<i64: 1, 4, 342>}, {pipeline_mode = #tpu.pipeline_mode<synchronous>, transform_indices = @transform_1, window_bounds = array<i64: 8, 36>}, {pipeline_mode = #tpu.pipeline_mode<synchronous>, transform_indices = @transform_2, window_bounds = array<i64: 8, 1>}, {pipeline_mode = #tpu.pipeline_mode<synchronous>, transform_indices = @transform_3, window_bounds = array<i64: 8, 1>}, {pipeline_mode = #tpu.pipeline_mode<synchronous>, transform_indices = @transform_4, window_bounds = array<i64: 8, 1>}, {transform_indices = @transform_5, window_bounds = array<i64: 1, 8, 256>}, {transform_indices = @transform_6, window_bounds = array<i64: 1, 8, 256>}, {transform_indices = @transform_7, window_bounds = array<i64: 1, 8, 256>}, {transform_indices = @transform_8, window_bounds = array<i64: 1, 8, 256>}]} {
    %c0 = arith.constant 0 : index
    %c0_0 = arith.constant 0 : index
    %0 = vector.load %arg2[%c0, %c0_0] : memref<8x36xf32, #tpu.memory_space<vmem>>, vector<8x36xf32>
    %c0_1 = arith.constant 0 : index
    %c0_2 = arith.constant 0 : index
    %1 = vector.load %arg3[%c0_1, %c0_2] : memref<8x1xf32, #tpu.memory_space<vmem>>, vector<8x1xf32>
    %c0_3 = arith.constant 0 : index
    %c0_4 = arith.constant 0 : index
    %2 = vector.load %arg4[%c0_3, %c0_4] : memref<8x1xf32, #tpu.memory_space<vmem>>, vector<8x1xf32>
    %c0_5 = arith.constant 0 : index
    %c0_6 = arith.constant 0 : index
    %3 = vector.load %arg5[%c0_5, %c0_6] : memref<8x1xf32, #tpu.memory_space<vmem>>, vector<8x1xf32>
    %c0_7 = arith.constant 0 : index
    %c0_8 = arith.constant 0 : index
    %c0_9 = arith.constant 0 : index
    %4 = vector.load %arg1[%c0_7, %c0_8, %c0_9] : memref<1x4x342xf32, #tpu.memory_space<vmem>>, vector<1x4x342xf32>
    %5 = vector.shape_cast %4 : vector<1x4x342xf32> to vector<4x342xf32>
    %6 = vector.extract_strided_slice %5 {offsets = [0, 0], sizes = [4, 288], strides = [1, 1]} : vector<4x342xf32> to vector<4x288xf32>
    %c0_10 = arith.constant 0 : index
    %c0_11 = arith.constant 0 : index
    %7 = vector.load %arg10[%c0_10, %c0_11] : memref<36x288xf32, #tpu.memory_space<vmem>>, vector<4x288xf32>
    tpu.vector_store %arg10[%c0_10, %c0_11], %6 {strides = array<i32>} : memref<36x288xf32, #tpu.memory_space<vmem>>, vector<4x288xf32>,
    %8 = vector.extract_strided_slice %5 {offsets = [0, 1], sizes = [4, 288], strides = [1, 1]} : vector<4x342xf32> to vector<4x288xf32>
    %c4 = arith.constant 4 : index
    %c0_12 = arith.constant 0 : index
    %9 = vector.load %arg10[%c4, %c0_12] : memref<36x288xf32, #tpu.memory_space<vmem>>, vector<4x288xf32>
    tpu.vector_store %arg10[%c4, %c0_12], %8 {strides = array<i32>} : memref<36x288xf32, #tpu.memory_space<vmem>>, vector<4x288xf32>,
    %10 = vector.extract_strided_slice %5 {offsets = [0, 2], sizes = [4, 288], strides = [1, 1]} : vector<4x342xf32> to vector<4x288xf32>
    %c8 = arith.constant 8 : index
    %c0_13 = arith.constant 0 : index
    %11 = vector.load %arg10[%c8, %c0_13] : memref<36x288xf32, #tpu.memory_space<vmem>>, vector<4x288xf32>
    tpu.vector_store %arg10[%c8, %c0_13], %10 {strides = array<i32>} : memref<36x288xf32, #tpu.memory_space<vmem>>, vector<4x288xf32>,
    %12 = vector.extract_strided_slice %5 {offsets = [0, 18], sizes = [4, 288], strides = [1, 1]} : vector<4x342xf32> to vector<4x288xf32>
    %c12 = arith.constant 12 : index
    %c0_14 = arith.constant 0 : index
    %13 = vector.load %arg10[%c12, %c0_14] : memref<36x288xf32, #tpu.memory_space<vmem>>, vector<4x288xf32>
    tpu.vector_store %arg10[%c12, %c0_14], %12 {strides = array<i32>} : memref<36x288xf32, #tpu.memory_space<vmem>>, vector<4x288xf32>,
    %14 = vector.extract_strided_slice %5 {offsets = [0, 19], sizes = [4, 288], strides = [1, 1]} : vector<4x342xf32> to vector<4x288xf32>
    %c16 = arith.constant 16 : index
    %c0_15 = arith.constant 0 : index
    %15 = vector.load %arg10[%c16, %c0_15] : memref<36x288xf32, #tpu.memory_space<vmem>>, vector<4x288xf32>
    tpu.vector_store %arg10[%c16, %c0_15], %14 {strides = array<i32>} : memref<36x288xf32, #tpu.memory_space<vmem>>, vector<4x288xf32>,
    %16 = vector.extract_strided_slice %5 {offsets = [0, 20], sizes = [4, 288], strides = [1, 1]} : vector<4x342xf32> to vector<4x288xf32>
    %c20 = arith.constant 20 : index
    %c0_16 = arith.constant 0 : index
    %17 = vector.load %arg10[%c20, %c0_16] : memref<36x288xf32, #tpu.memory_space<vmem>>, vector<4x288xf32>
    tpu.vector_store %arg10[%c20, %c0_16], %16 {strides = array<i32>} : memref<36x288xf32, #tpu.memory_space<vmem>>, vector<4x288xf32>,
    %18 = vector.extract_strided_slice %5 {offsets = [0, 36], sizes = [4, 288], strides = [1, 1]} : vector<4x342xf32> to vector<4x288xf32>
    %c24 = arith.constant 24 : index
    %c0_17 = arith.constant 0 : index
    %19 = vector.load %arg10[%c24, %c0_17] : memref<36x288xf32, #tpu.memory_space<vmem>>, vector<4x288xf32>
    tpu.vector_store %arg10[%c24, %c0_17], %18 {strides = array<i32>} : memref<36x288xf32, #tpu.memory_space<vmem>>, vector<4x288xf32>,
    %20 = vector.extract_strided_slice %5 {offsets = [0, 37], sizes = [4, 288], strides = [1, 1]} : vector<4x342xf32> to vector<4x288xf32>
    %c28 = arith.constant 28 : index
    %c0_18 = arith.constant 0 : index
    %21 = vector.load %arg10[%c28, %c0_18] : memref<36x288xf32, #tpu.memory_space<vmem>>, vector<4x288xf32>
    tpu.vector_store %arg10[%c28, %c0_18], %20 {strides = array<i32>} : memref<36x288xf32, #tpu.memory_space<vmem>>, vector<4x288xf32>,
    %22 = vector.extract_strided_slice %5 {offsets = [0, 38], sizes = [4, 288], strides = [1, 1]} : vector<4x342xf32> to vector<4x288xf32>
    %c32 = arith.constant 32 : index
    %c0_19 = arith.constant 0 : index
    %23 = vector.load %arg10[%c32, %c0_19] : memref<36x288xf32, #tpu.memory_space<vmem>>, vector<4x288xf32>
    tpu.vector_store %arg10[%c32, %c0_19], %22 {strides = array<i32>} : memref<36x288xf32, #tpu.memory_space<vmem>>, vector<4x288xf32>,
    %c0_20 = arith.constant 0 : index
    %c0_21 = arith.constant 0 : index
    %24 = vector.load %arg10[%c0_20, %c0_21] : memref<36x288xf32, #tpu.memory_space<vmem>>, vector<36x288xf32>
    %cst = arith.constant dense<0.000000e+00> : vector<8x288xf32>
    %25 = tpu.matmul %0, %24, %cst {dimension_numbers = #tpu.dot_dimension_numbers<[1], [0], [0], [1], [0, 0, 1, 1], [], []>} : vector<8x36xf32>, vector<36x288xf32>, vector<8x288xf32> -> vector<8x288xf32>
    %26 = vector.extract_strided_slice %25 {offsets = [0, 0], sizes = [8, 16], strides = [1, 1]} : vector<8x288xf32> to vector<8x16xf32>
    %c0_22 = arith.constant 0 : index
    %c0_23 = arith.constant 0 : index
    %27 = vector.load %arg11[%c0_22, %c0_23] : memref<8x256xf32, #tpu.memory_space<vmem>>, vector<8x16xf32>
    tpu.vector_store %arg11[%c0_22, %c0_23], %26 {strides = array<i32>} : memref<8x256xf32, #tpu.memory_space<vmem>>, vector<8x16xf32>,
    %28 = vector.extract_strided_slice %25 {offsets = [0, 18], sizes = [8, 16], strides = [1, 1]} : vector<8x288xf32> to vector<8x16xf32>
    %c0_24 = arith.constant 0 : index
    %c16_25 = arith.constant 16 : index
    %29 = vector.load %arg11[%c0_24, %c16_25] : memref<8x256xf32, #tpu.memory_space<vmem>>, vector<8x16xf32>
    tpu.vector_store %arg11[%c0_24, %c16_25], %28 {strides = array<i32>} : memref<8x256xf32, #tpu.memory_space<vmem>>, vector<8x16xf32>,
    %30 = vector.extract_strided_slice %25 {offsets = [0, 36], sizes = [8, 16], strides = [1, 1]} : vector<8x288xf32> to vector<8x16xf32>
    %c0_26 = arith.constant 0 : index
    %c32_27 = arith.constant 32 : index
    %31 = vector.load %arg11[%c0_26, %c32_27] : memref<8x256xf32, #tpu.memory_space<vmem>>, vector<8x16xf32>
    tpu.vector_store %arg11[%c0_26, %c32_27], %30 {strides = array<i32>} : memref<8x256xf32, #tpu.memory_space<vmem>>, vector<8x16xf32>,
    %32 = vector.extract_strided_slice %25 {offsets = [0, 54], sizes = [8, 16], strides = [1, 1]} : vector<8x288xf32> to vector<8x16xf32>
    %c0_28 = arith.constant 0 : index
    %c48 = arith.constant 48 : index
    %33 = vector.load %arg11[%c0_28, %c48] : memref<8x256xf32, #tpu.memory_space<vmem>>, vector<8x16xf32>
    tpu.vector_store %arg11[%c0_28, %c48], %32 {strides = array<i32>} : memref<8x256xf32, #tpu.memory_space<vmem>>, vector<8x16xf32>,
    %34 = vector.extract_strided_slice %25 {offsets = [0, 72], sizes = [8, 16], strides = [1, 1]} : vector<8x288xf32> to vector<8x16xf32>
    %c0_29 = arith.constant 0 : index
    %c64 = arith.constant 64 : index
    %35 = vector.load %arg11[%c0_29, %c64] : memref<8x256xf32, #tpu.memory_space<vmem>>, vector<8x16xf32>
    tpu.vector_store %arg11[%c0_29, %c64], %34 {strides = array<i32>} : memref<8x256xf32, #tpu.memory_space<vmem>>, vector<8x16xf32>,
    %36 = vector.extract_strided_slice %25 {offsets = [0, 90], sizes = [8, 16], strides = [1, 1]} : vector<8x288xf32> to vector<8x16xf32>
    %c0_30 = arith.constant 0 : index
    %c80 = arith.constant 80 : index
    %37 = vector.load %arg11[%c0_30, %c80] : memref<8x256xf32, #tpu.memory_space<vmem>>, vector<8x16xf32>
    tpu.vector_store %arg11[%c0_30, %c80], %36 {strides = array<i32>} : memref<8x256xf32, #tpu.memory_space<vmem>>, vector<8x16xf32>,
    %38 = vector.extract_strided_slice %25 {offsets = [0, 108], sizes = [8, 16], strides = [1, 1]} : vector<8x288xf32> to vector<8x16xf32>
    %c0_31 = arith.constant 0 : index
    %c96 = arith.constant 96 : index
    %39 = vector.load %arg11[%c0_31, %c96] : memref<8x256xf32, #tpu.memory_space<vmem>>, vector<8x16xf32>
    tpu.vector_store %arg11[%c0_31, %c96], %38 {strides = array<i32>} : memref<8x256xf32, #tpu.memory_space<vmem>>, vector<8x16xf32>,
    %40 = vector.extract_strided_slice %25 {offsets = [0, 126], sizes = [8, 16], strides = [1, 1]} : vector<8x288xf32> to vector<8x16xf32>
    %c0_32 = arith.constant 0 : index
    %c112 = arith.constant 112 : index
    %41 = vector.load %arg11[%c0_32, %c112] : memref<8x256xf32, #tpu.memory_space<vmem>>, vector<8x16xf32>
    tpu.vector_store %arg11[%c0_32, %c112], %40 {strides = array<i32>} : memref<8x256xf32, #tpu.memory_space<vmem>>, vector<8x16xf32>,
    %42 = vector.extract_strided_slice %25 {offsets = [0, 144], sizes = [8, 16], strides = [1, 1]} : vector<8x288xf32> to vector<8x16xf32>
    %c0_33 = arith.constant 0 : index
    %c128 = arith.constant 128 : index
    %43 = vector.load %arg11[%c0_33, %c128] : memref<8x256xf32, #tpu.memory_space<vmem>>, vector<8x16xf32>
    tpu.vector_store %arg11[%c0_33, %c128], %42 {strides = array<i32>} : memref<8x256xf32, #tpu.memory_space<vmem>>, vector<8x16xf32>,
    %44 = vector.extract_strided_slice %25 {offsets = [0, 162], sizes = [8, 16], strides = [1, 1]} : vector<8x288xf32> to vector<8x16xf32>
    %c0_34 = arith.constant 0 : index
    %c144 = arith.constant 144 : index
    %45 = vector.load %arg11[%c0_34, %c144] : memref<8x256xf32, #tpu.memory_space<vmem>>, vector<8x16xf32>
    tpu.vector_store %arg11[%c0_34, %c144], %44 {strides = array<i32>} : memref<8x256xf32, #tpu.memory_space<vmem>>, vector<8x16xf32>,
    %46 = vector.extract_strided_slice %25 {offsets = [0, 180], sizes = [8, 16], strides = [1, 1]} : vector<8x288xf32> to vector<8x16xf32>
    %c0_35 = arith.constant 0 : index
    %c160 = arith.constant 160 : index
    %47 = vector.load %arg11[%c0_35, %c160] : memref<8x256xf32, #tpu.memory_space<vmem>>, vector<8x16xf32>
    tpu.vector_store %arg11[%c0_35, %c160], %46 {strides = array<i32>} : memref<8x256xf32, #tpu.memory_space<vmem>>, vector<8x16xf32>,
    %48 = vector.extract_strided_slice %25 {offsets = [0, 198], sizes = [8, 16], strides = [1, 1]} : vector<8x288xf32> to vector<8x16xf32>
    %c0_36 = arith.constant 0 : index
    %c176 = arith.constant 176 : index
    %49 = vector.load %arg11[%c0_36, %c176] : memref<8x256xf32, #tpu.memory_space<vmem>>, vector<8x16xf32>
    tpu.vector_store %arg11[%c0_36, %c176], %48 {strides = array<i32>} : memref<8x256xf32, #tpu.memory_space<vmem>>, vector<8x16xf32>,
    %50 = vector.extract_strided_slice %25 {offsets = [0, 216], sizes = [8, 16], strides = [1, 1]} : vector<8x288xf32> to vector<8x16xf32>
    %c0_37 = arith.constant 0 : index
    %c192 = arith.constant 192 : index
    %51 = vector.load %arg11[%c0_37, %c192] : memref<8x256xf32, #tpu.memory_space<vmem>>, vector<8x16xf32>
    tpu.vector_store %arg11[%c0_37, %c192], %50 {strides = array<i32>} : memref<8x256xf32, #tpu.memory_space<vmem>>, vector<8x16xf32>,
    %52 = vector.extract_strided_slice %25 {offsets = [0, 234], sizes = [8, 16], strides = [1, 1]} : vector<8x288xf32> to vector<8x16xf32>
    %c0_38 = arith.constant 0 : index
    %c208 = arith.constant 208 : index
    %53 = vector.load %arg11[%c0_38, %c208] : memref<8x256xf32, #tpu.memory_space<vmem>>, vector<8x16xf32>
    tpu.vector_store %arg11[%c0_38, %c208], %52 {strides = array<i32>} : memref<8x256xf32, #tpu.memory_space<vmem>>, vector<8x16xf32>,
    %54 = vector.extract_strided_slice %25 {offsets = [0, 252], sizes = [8, 16], strides = [1, 1]} : vector<8x288xf32> to vector<8x16xf32>
    %c0_39 = arith.constant 0 : index
    %c224 = arith.constant 224 : index
    %55 = vector.load %arg11[%c0_39, %c224] : memref<8x256xf32, #tpu.memory_space<vmem>>, vector<8x16xf32>
    tpu.vector_store %arg11[%c0_39, %c224], %54 {strides = array<i32>} : memref<8x256xf32, #tpu.memory_space<vmem>>, vector<8x16xf32>,
    %56 = vector.extract_strided_slice %25 {offsets = [0, 270], sizes = [8, 16], strides = [1, 1]} : vector<8x288xf32> to vector<8x16xf32>
    %c0_40 = arith.constant 0 : index
    %c240 = arith.constant 240 : index
    %57 = vector.load %arg11[%c0_40, %c240] : memref<8x256xf32, #tpu.memory_space<vmem>>, vector<8x16xf32>
    tpu.vector_store %arg11[%c0_40, %c240], %56 {strides = array<i32>} : memref<8x256xf32, #tpu.memory_space<vmem>>, vector<8x16xf32>,
    %c0_41 = arith.constant 0 : index
    %c0_42 = arith.constant 0 : index
    %58 = vector.load %arg11[%c0_41, %c0_42] : memref<8x256xf32, #tpu.memory_space<vmem>>, vector<8x256xf32>
    %59 = vector.broadcast %1 : vector<8x1xf32> to vector<8x256xf32>
    %60 = arith.addf %58, %59 : vector<8x256xf32>
    %c0_43 = arith.constant 0 : index
    %c0_44 = arith.constant 0 : index
    %c0_45 = arith.constant 0 : index
    %61 = vector.load %arg6[%c0_43, %c0_44, %c0_45] : memref<1x8x256xf32, #tpu.memory_space<vmem>>, vector<1x8x256xf32>
    %62 = vector.shape_cast %61 : vector<1x8x256xf32> to vector<8x256xf32>
    %c0_46 = arith.constant 0 : index
    %c0_47 = arith.constant 0 : index
    %c0_48 = arith.constant 0 : index
    %63 = vector.load %arg7[%c0_46, %c0_47, %c0_48] : memref<1x8x256xf32, #tpu.memory_space<vmem>>, vector<1x8x256xf32>
    %64 = vector.shape_cast %63 : vector<1x8x256xf32> to vector<8x256xf32>
    %65 = vector.broadcast %2 : vector<8x1xf32> to vector<8x256xf32>
    %66 = arith.mulf %62, %65 : vector<8x256xf32>
    %cst_49 = arith.constant 1.000000e+00 : f32
    %67 = vector.broadcast %cst_49 : f32 to vector<8x256xf32>
    %68 = arith.subf %67, %64 : vector<8x256xf32>
    %69 = arith.mulf %66, %68 : vector<8x256xf32>
    %70 = arith.addf %69, %60 : vector<8x256xf32>
    %71 = vector.broadcast %3 : vector<8x1xf32> to vector<8x256xf32>
    %72 = arith.cmpf ogt, %70, %71 : vector<8x256xf32>
    %73 = arith.extui %72 : vector<8x256xi1> to vector<8x256xi32>
    %74 = arith.sitofp %73 : vector<8x256xi32> to vector<8x256xf32>
    %c0_50 = arith.constant 0 : index
    %c0_51 = arith.constant 0 : index
    %c0_52 = arith.constant 0 : index
    %75 = vector.load %arg8[%c0_50, %c0_51, %c0_52] : memref<1x8x256xf32, #tpu.memory_space<vmem>>, vector<1x8x256xf32>
    %76 = vector.shape_cast %75 : vector<1x8x256xf32> to vector<8x256xf32>
    %77 = vector.shape_cast %70 : vector<8x256xf32> to vector<1x8x256xf32>
    tpu.vector_store %arg8[%c0_50, %c0_51, %c0_52], %77 {strides = array<i32>} : memref<1x8x256xf32, #tpu.memory_space<vmem>>, vector<1x8x256xf32>,
    %c0_53 = arith.constant 0 : index
    %c0_54 = arith.constant 0 : index
    %c0_55 = arith.constant 0 : index
    %78 = vector.load %arg9[%c0_53, %c0_54, %c0_55] : memref<1x8x256xf32, #tpu.memory_space<vmem>>, vector<1x8x256xf32>
    %79 = vector.shape_cast %78 : vector<1x8x256xf32> to vector<8x256xf32>
    %80 = vector.shape_cast %74 : vector<8x256xf32> to vector<1x8x256xf32>
    tpu.vector_store %arg9[%c0_53, %c0_54, %c0_55], %80 {strides = array<i32>} : memref<1x8x256xf32, #tpu.memory_space<vmem>>, vector<1x8x256xf32>,
    return
  }
  func.func @transform_0(%arg0: i32) -> (i32, i32, i32) {
    %c0_i32 = arith.constant 0 : i32
    %c0_i32_0 = arith.constant 0 : i32
    %c0_i32_1 = arith.constant 0 : i32
    return %arg0, %c0_i32, %c0_i32_0 : i32, i32, i32
  }
  func.func @transform_1(%arg0: i32) -> (i32, i32) {
    %c0_i32 = arith.constant 0 : i32
    %c0_i32_0 = arith.constant 0 : i32
    %c0_i32_1 = arith.constant 0 : i32
    return %c0_i32, %c0_i32_0 : i32, i32
  }
  func.func @transform_2(%arg0: i32) -> (i32, i32) {
    %c0_i32 = arith.constant 0 : i32
    %c0_i32_0 = arith.constant 0 : i32
    %c0_i32_1 = arith.constant 0 : i32
    return %c0_i32, %c0_i32_0 : i32, i32
  }
  func.func @transform_3(%arg0: i32) -> (i32, i32) {
    %c0_i32 = arith.constant 0 : i32
    %c0_i32_0 = arith.constant 0 : i32
    %c0_i32_1 = arith.constant 0 : i32
    return %c0_i32, %c0_i32_0 : i32, i32
  }
  func.func @transform_4(%arg0: i32) -> (i32, i32) {
    %c0_i32 = arith.constant 0 : i32
    %c0_i32_0 = arith.constant 0 : i32
    %c0_i32_1 = arith.constant 0 : i32
    return %c0_i32, %c0_i32_0 : i32, i32
  }
  func.func @transform_5(%arg0: i32) -> (i32, i32, i32) {
    %c0_i32 = arith.constant 0 : i32
    %c0_i32_0 = arith.constant 0 : i32
    %c0_i32_1 = arith.constant 0 : i32
    return %arg0, %c0_i32, %c0_i32_0 : i32, i32, i32
  }
  func.func @transform_6(%arg0: i32) -> (i32, i32, i32) {
    %c0_i32 = arith.constant 0 : i32
    %c0_i32_0 = arith.constant 0 : i32
    %c0_i32_1 = arith.constant 0 : i32
    return %arg0, %c0_i32, %c0_i32_0 : i32, i32, i32
  }
  func.func @transform_7(%arg0: i32) -> (i32, i32, i32) {
    %c0_i32 = arith.constant 0 : i32
    %c0_i32_0 = arith.constant 0 : i32
    %c0_i32_1 = arith.constant 0 : i32
    return %arg0, %c0_i32, %c0_i32_0 : i32, i32, i32
  }
  func.func @transform_8(%arg0: i32) -> (i32, i32, i32) {
    %c0_i32 = arith.constant 0 : i32
    %c0_i32_0 = arith.constant 0 : i32
    %c0_i32_1 = arith.constant 0 : i32
    return %arg0, %c0_i32, %c0_i32_0 : i32, i32, i32
  }
}

</mosaic_0001>

<llo_original>
// kernel: tpu_custom_call.1
$region0: #{tpu_custom_call.1}
  #allocation0 [shape = 'u32[]', space=smem, size = 0x4, offset = 0x4, fixed_abs, tag = 'smem constant byte address 0x4 - core index']
  #allocation1 [shape = 'u32[72,128]{1,0:T(1,128)}', space=vmem, size = 0x9000, scoped, tag = 'internal scratch']
  #allocation2 [shape = 'f32[36,288]{1,0:T(8,128)}', space=vmem, size = 0xf000, scoped, tag = 'scratch operand']
  #allocation3 [shape = 'f32[8,256]{1,0:T(8,128)}', space=vmem, size = 0x2000, scoped, tag = 'scratch operand']
  %s0 = inlined_call_operand.hbm [shape: f32[2,4,342], index: 0, kind: input, shape index: {}]
  %s1 = inlined_call_operand.vmem [shape: f32[8,36], index: 1, kind: input, shape index: {}]
  %s2 = inlined_call_operand.vmem [shape: f32[8,1], index: 2, kind: input, shape index: {}]
  %s3 = inlined_call_operand.vmem [shape: f32[8,1], index: 3, kind: input, shape index: {}]
  %s4 = inlined_call_operand.vmem [shape: f32[8,1], index: 4, kind: input, shape index: {}]
  %s5 = inlined_call_operand.hbm [shape: f32[2,8,256], index: 5, kind: input, shape index: {}]
  %s6 = inlined_call_operand.hbm [shape: f32[2,8,256], index: 6, kind: input, shape index: {}]
  %s7 = inlined_call_operand.hbm [shape: f32[2,8,256], index: 7, kind: output, shape index: {0}]
  %s8 = inlined_call_operand.hbm [shape: f32[2,8,256], index: 8, kind: output, shape index: {1}]
  %9 = xla_tuple %s7, %s8
  %s10 = sld [smem:[#allocation0]]
  $region81: #{tpu_custom_call.1} parent=0
    _
  %s12 = ssub.s32 1, %s10
  %s13 = scalar_select 0, %s12, %s10
  $region1: #{tpu_custom_call.1} parent=0
    #allocation4 [shape = 'u8[12288]{0}', space=vmem, size = 0x3000, scoped, tag = 'input window, operand 0']
    #allocation5 [shape = 's32[2]{0}', space=sflag, size = 0x8, scoped, tag = 'scoped memory for tpu_custom_call.1']
    #allocation6 [shape = 's32[2]{0}', space=sflag, size = 0x8, scoped, tag = 'scoped memory for tpu_custom_call.1']
    #allocation7 [shape = 'u8[16384]{0}', space=vmem, size = 0x4000, scoped, tag = 'input window, operand 5']
    #allocation8 [shape = 's32[2]{0}', space=sflag, size = 0x8, scoped, tag = 'scoped memory for tpu_custom_call.1']
    #allocation9 [shape = 'u8[16384]{0}', space=vmem, size = 0x4000, scoped, tag = 'input window, operand 6']
    #allocation10 [shape = 'u8[16384]{0}', space=vmem, size = 0x4000, scoped, tag = 'output window, operand 0']
    #allocation11 [shape = 'u8[16384]{0}', space=vmem, size = 0x4000, scoped, tag = 'output window, operand 1']
    #allocation12 [shape = 's32[2]{0}', space=sflag, size = 0x8, scoped, tag = 'scoped memory for tpu_custom_call.1']
    %14 = vsyncpa [#allocation5], 0
    %s15 = scalar_lea.sflag [#allocation5], 1
    %16 = vsyncpa %s15, 0
    %17 = vsyncpa [#allocation8], 0
    %s18 = scalar_lea.sflag [#allocation8], 1
    %19 = vsyncpa %s18, 0
    %20 = vsyncpa [#allocation6], 0
    %s21 = scalar_lea.sflag [#allocation6], 1
    %22 = vsyncpa %s21, 0
    %23 = vsyncpa [#allocation12], 0
    %s24 = scalar_lea.sflag [#allocation12], 1
    %25 = vsyncpa %s24, 0
    loop: start=0, step=1, limit=4
    $region2: #{tpu_custom_call.1} parent=1 // loop_pre_header
      _
    $region3: #{tpu_custom_call.1} parent=1 // loop_header
      %s27 = sphi 0, %s31
      %p28 = scmp.ge.s32.totalorder %s27, 4
      %s37 = sphi 0, %s39
      %s40 = sphi 0, %s37
      %s41 = sphi 0, %s40
      %s57 = sphi 0, %s41
      %s61 = sphi 0, %s61
      %s63 = sphi 0, %s61
      %s64 = sphi 0, %s63
      %s78 = sphi 0, %s64
      %s82 = sphi 0, %s82
      %s84 = sphi 0, %s82
      %s85 = sphi 0, %s84
      %s99 = sphi 0, %s85
      %s103 = sphi 0, %s103
      %s105 = sphi 0, %s103
      %s106 = sphi 0, %s105
      %s120 = sphi 0, %s106
      %s124 = sphi 0, %s124
      %s126 = sphi 0, %s124
      %s127 = sphi 0, %s126
      %s141 = sphi 0, %s127
      %s147 = sphi 0, %s149
      %s150 = sphi 0, %s147
      %s151 = sphi 0, %s150
      %s167 = sphi 0, %s151
      %s173 = sphi 0, %s175
      %s176 = sphi 0, %s173
      %s177 = sphi 0, %s176
      %s193 = sphi 0, %s177
      %s199 = sphi 0, %s201
      %s202 = sphi 0, %s199
      %s203 = sphi 0, %s202
      %s219 = sphi 0, %s203
      %s225 = sphi 0, %s227
      %s228 = sphi 0, %s225
      %s229 = sphi 0, %s228
      %s245 = sphi 0, %s229
    $region4: #{tpu_custom_call.1} parent=1 // loop_header_branch
      %30 = sbr.rel (%p28) target = $region8
    $region5: #{tpu_custom_call.1} parent=1 // loop_body
      %s32 = ssub.s32 %s27, 1
      %s33 = ssub.s32 %s27, 2
      %s34 = sadd.s32 %s27, 1
      %s35 = ssub.s32 %s27, %s34
      %p36 = scmp.eq.s32.totalorder %s35, 0
      %s38 = sadd.s32 %s37, 1
      %s39 = scalar_select %p36, %s37, %s38
      %p42 = pneg %p36
      %p43 = scmp.eq.s32.totalorder %s27, 1
      %p44 = por %p42, %p43
      %p45 = scmp.ne.s32.totalorder %s37, %s40
      %p46 = scmp.eq.s32.totalorder %s27, 0
      %p47 = por %p45, %p46
      %p48 = scmp.ne.s32.totalorder %s37, %s40
      %p49 = scmp.eq.s32.totalorder %s32, 1
      %p50 = por %p48, %p49
      %p51 = scmp.ne.s32.totalorder %s40, %s41
      %p52 = scmp.eq.s32.totalorder %s32, 0
      %p53 = por %p51, %p52
      %p54 = scmp.ne.s32.totalorder %s40, %s41
      %p55 = scmp.eq.s32.totalorder %s33, 1
      %p56 = por %p54, %p55
      %p58 = scmp.ne.s32.totalorder %s41, %s57
      %p59 = scmp.eq.s32.totalorder %s33, 0
      %p60 = por %p58, %p59
      %s62 = sadd.s32 %s61, 1
      %p65 = scmp.eq.s32.totalorder %s27, 1
      %p66 = scmp.ne.s32.totalorder %s61, %s63
      %p67 = scmp.eq.s32.totalorder %s27, 0
      %p68 = por %p66, %p67
      %p69 = scmp.ne.s32.totalorder %s61, %s63
      %p70 = scmp.eq.s32.totalorder %s32, 1
      %p71 = por %p69, %p70
      %p72 = scmp.ne.s32.totalorder %s63, %s64
      %p73 = scmp.eq.s32.totalorder %s32, 0
      %p74 = por %p72, %p73
      %p75 = scmp.ne.s32.totalorder %s63, %s64
      %p76 = scmp.eq.s32.totalorder %s33, 1
      %p77 = por %p75, %p76
      %p79 = scmp.ne.s32.totalorder %s64, %s78
      %p80 = scmp.eq.s32.totalorder %s33, 0
      %p81 = por %p79, %p80
      %s83 = sadd.s32 %s82, 1
      %p86 = scmp.eq.s32.totalorder %s27, 1
      %p87 = scmp.ne.s32.totalorder %s82, %s84
      %p88 = scmp.eq.s32.totalorder %s27, 0
      %p89 = por %p87, %p88
      %p90 = scmp.ne.s32.totalorder %s82, %s84
      %p91 = scmp.eq.s32.totalorder %s32, 1
      %p92 = por %p90, %p91
      %p93 = scmp.ne.s32.totalorder %s84, %s85
      %p94 = scmp.eq.s32.totalorder %s32, 0
      %p95 = por %p93, %p94
      %p96 = scmp.ne.s32.totalorder %s84, %s85
      %p97 = scmp.eq.s32.totalorder %s33, 1
      %p98 = por %p96, %p97
      %p100 = scmp.ne.s32.totalorder %s85, %s99
      %p101 = scmp.eq.s32.totalorder %s33, 0
      %p102 = por %p100, %p101
      %s104 = sadd.s32 %s103, 1
      %p107 = scmp.eq.s32.totalorder %s27, 1
      %p108 = scmp.ne.s32.totalorder %s103, %s105
      %p109 = scmp.eq.s32.totalorder %s27, 0
      %p110 = por %p108, %p109
      %p111 = scmp.ne.s32.totalorder %s103, %s105
      %p112 = scmp.eq.s32.totalorder %s32, 1
      %p113 = por %p111, %p112
      %p114 = scmp.ne.s32.totalorder %s105, %s106
      %p115 = scmp.eq.s32.totalorder %s32, 0
      %p116 = por %p114, %p115
      %p117 = scmp.ne.s32.totalorder %s105, %s106
      %p118 = scmp.eq.s32.totalorder %s33, 1
      %p119 = por %p117, %p118
      %p121 = scmp.ne.s32.totalorder %s106, %s120
      %p122 = scmp.eq.s32.totalorder %s33, 0
      %p123 = por %p121, %p122
      %s125 = sadd.s32 %s124, 1
      %p128 = scmp.eq.s32.totalorder %s27, 1
      %p129 = scmp.ne.s32.totalorder %s124, %s126
      %p130 = scmp.eq.s32.totalorder %s27, 0
      %p131 = por %p129, %p130
      %p132 = scmp.ne.s32.totalorder %s124, %s126
      %p133 = scmp.eq.s32.totalorder %s32, 1
      %p134 = por %p132, %p133
      %p135 = scmp.ne.s32.totalorder %s126, %s127
      %p136 = scmp.eq.s32.totalorder %s32, 0
      %p137 = por %p135, %p136
      %p138 = scmp.ne.s32.totalorder %s126, %s127
      %p139 = scmp.eq.s32.totalorder %s33, 1
      %p140 = por %p138, %p139
      %p142 = scmp.ne.s32.totalorder %s127, %s141
      %p143 = scmp.eq.s32.totalorder %s33, 0
      %p144 = por %p142, %p143
      %s145 = ssub.s32 %s27, %s34
      %p146 = scmp.eq.s32.totalorder %s145, 0
      %s148 = sadd.s32 %s147, 1
      %s149 = scalar_select %p146, %s147, %s148
      %p152 = pneg %p146
      %p153 = scmp.eq.s32.totalorder %s27, 1
      %p154 = por %p152, %p153
      %p155 = scmp.ne.s32.totalorder %s147, %s150
      %p156 = scmp.eq.s32.totalorder %s27, 0
      %p157 = por %p155, %p156
      %p158 = scmp.ne.s32.totalorder %s147, %s150
      %p159 = scmp.eq.s32.totalorder %s32, 1
      %p160 = por %p158, %p159
      %p161 = scmp.ne.s32.totalorder %s150, %s151
      %p162 = scmp.eq.s32.totalorder %s32, 0
      %p163 = por %p161, %p162
      %p164 = scmp.ne.s32.totalorder %s150, %s151
      %p165 = scmp.eq.s32.totalorder %s33, 1
      %p166 = por %p164, %p165
      %p168 = scmp.ne.s32.totalorder %s151, %s167
      %p169 = scmp.eq.s32.totalorder %s33, 0
      %p170 = por %p168, %p169
      %s171 = ssub.s32 %s27, %s34
      %p172 = scmp.eq.s32.totalorder %s171, 0
      %s174 = sadd.s32 %s173, 1
      %s175 = scalar_select %p172, %s173, %s174
      %p178 = pneg %p172
      %p179 = scmp.eq.s32.totalorder %s27, 1
      %p180 = por %p178, %p179
      %p181 = scmp.ne.s32.totalorder %s173, %s176
      %p182 = scmp.eq.s32.totalorder %s27, 0
      %p183 = por %p181, %p182
      %p184 = scmp.ne.s32.totalorder %s173, %s176
      %p185 = scmp.eq.s32.totalorder %s32, 1
      %p186 = por %p184, %p185
      %p187 = scmp.ne.s32.totalorder %s176, %s177
      %p188 = scmp.eq.s32.totalorder %s32, 0
      %p189 = por %p187, %p188
      %p190 = scmp.ne.s32.totalorder %s176, %s177
      %p191 = scmp.eq.s32.totalorder %s33, 1
      %p192 = por %p190, %p191
      %p194 = scmp.ne.s32.totalorder %s177, %s193
      %p195 = scmp.eq.s32.totalorder %s33, 0
      %p196 = por %p194, %p195
      %s197 = ssub.s32 %s27, %s34
      %p198 = scmp.eq.s32.totalorder %s197, 0
      %s200 = sadd.s32 %s199, 1
      %s201 = scalar_select %p198, %s199, %s200
      %p204 = pneg %p198
      %p205 = scmp.eq.s32.totalorder %s27, 1
      %p206 = por %p204, %p205
      %p207 = scmp.ne.s32.totalorder %s199, %s202
      %p208 = scmp.eq.s32.totalorder %s27, 0
      %p209 = por %p207, %p208
      %p210 = scmp.ne.s32.totalorder %s199, %s202
      %p211 = scmp.eq.s32.totalorder %s32, 1
      %p212 = por %p210, %p211
      %p213 = scmp.ne.s32.totalorder %s202, %s203
      %p214 = scmp.eq.s32.totalorder %s32, 0
      %p215 = por %p213, %p214
      %p216 = scmp.ne.s32.totalorder %s202, %s203
      %p217 = scmp.eq.s32.totalorder %s33, 1
      %p218 = por %p216, %p217
      %p220 = scmp.ne.s32.totalorder %s203, %s219
      %p221 = scmp.eq.s32.totalorder %s33, 0
      %p222 = por %p220, %p221
      %s223 = ssub.s32 %s27, %s34
      %p224 = scmp.eq.s32.totalorder %s223, 0
      %s226 = sadd.s32 %s225, 1
      %s227 = scalar_select %p224, %s225, %s226
      %p230 = pneg %p224
      %p231 = scmp.eq.s32.totalorder %s27, 1
      %p232 = por %p230, %p231
      %p233 = scmp.ne.s32.totalorder %s225, %s228
      %p234 = scmp.eq.s32.totalorder %s27, 0
      %p235 = por %p233, %p234
      %p236 = scmp.ne.s32.totalorder %s225, %s228
      %p237 = scmp.eq.s32.totalorder %s32, 1
      %p238 = por %p236, %p237
      %p239 = scmp.ne.s32.totalorder %s228, %s229
      %p240 = scmp.eq.s32.totalorder %s32, 0
      %p241 = por %p239, %p240
      %p242 = scmp.ne.s32.totalorder %s228, %s229
      %p243 = scmp.eq.s32.totalorder %s33, 1
      %p244 = por %p242, %p243
      %p246 = scmp.ne.s32.totalorder %s229, %s245
      %p247 = scmp.eq.s32.totalorder %s33, 0
      %p248 = por %p246, %p247
      %p249 = scmp.le.s32.totalorder 1, %s27
      %p250 = scmp.lt.s32.totalorder %s27, 3
      %p251 = pnand %p249, %p250
      %p252 = pneg %p251
      // Predicated region
      $region9: #{tpu_custom_call.1} parent=5 // pred_check
        _
      $region10: #{tpu_custom_call.1} parent=5 // pred_check_branch
        %254 = sbr.rel (%p251) target = $region12
      $region11: #{tpu_custom_call.1} parent=5 // pred_region
        %s255 = ssub.s32 %s27, 1
        // Predicated region
        $region13: #{tpu_custom_call.1} parent=11 // pred_check
          %p256 = pneg %p74
        $region14: #{tpu_custom_call.1} parent=11 // pred_check_branch
          %258 = sbr.rel (%p256) target = $region16
        $region15: #{tpu_custom_call.1} parent=11 // pred_region
          _
        $region16: #{tpu_custom_call.1} parent=11 // pred_fallthru
          _
        // Predicated region
        $region17: #{tpu_custom_call.1} parent=11 // pred_check
          %p259 = pneg %p95
        $region18: #{tpu_custom_call.1} parent=11 // pred_check_branch
          %261 = sbr.rel (%p259) target = $region20
        $region19: #{tpu_custom_call.1} parent=11 // pred_region
          _
        $region20: #{tpu_custom_call.1} parent=11 // pred_fallthru
          _
        // Predicated region
        $region21: #{tpu_custom_call.1} parent=11 // pred_check
          %p262 = pneg %p116
        $region22: #{tpu_custom_call.1} parent=11 // pred_check_branch
          %264 = sbr.rel (%p262) target = $region24
        $region23: #{tpu_custom_call.1} parent=11 // pred_region
          _
        $region24: #{tpu_custom_call.1} parent=11 // pred_fallthru
          _
        // Predicated region
        $region25: #{tpu_custom_call.1} parent=11 // pred_check
          %p265 = pneg %p137
        $region26: #{tpu_custom_call.1} parent=11 // pred_check_branch
          %267 = sbr.rel (%p265) target = $region28
        $region27: #{tpu_custom_call.1} parent=11 // pred_region
          _
        $region28: #{tpu_custom_call.1} parent=11 // pred_fallthru
          _
      $region12: #{tpu_custom_call.1} parent=5 // pred_fallthru
        _
      %p268 = scmp.lt.s32.totalorder %s27, 2
      // Predicated region
      $region29: #{tpu_custom_call.1} parent=5 // pred_check
        %p269 = pneg %p268
      $region30: #{tpu_custom_call.1} parent=5 // pred_check_branch
        %271 = sbr.rel (%p269) target = $region32
      $region31: #{tpu_custom_call.1} parent=5 // pred_region
        // Predicated region
        $region33: #{tpu_custom_call.1} parent=31 // pred_check
          %p272 = pneg %p47
        $region34: #{tpu_custom_call.1} parent=31 // pred_check_branch
          %274 = sbr.rel (%p272) target = $region36
        $region35: #{tpu_custom_call.1} parent=31 // pred_region
          %s275 = sand.u32 %s37, 1
          %s276 = scalar_lea.sflag [#allocation5], %s275
          %s277 = sand.u32 %s37, 1
          %s278 = smul.addr %s277, 12
          %s279 = scalar_lea.vmem [#allocation4], %s278
          %281 = vsyncadd %s276, 0
          %s282 = smul.addr %s27, 3
          %s283 = smul.addr %s282, 4
          %s284 = scalar_lea.hbm %s0, %s283
          %s286 = sshll.u32 %s284, 4
          %s287 = int_to_ptr.hbm [resolvable:$true] %s286
          %s288 = sshll.u32 %s279, 4
          %s289 = int_to_ptr.vmem [resolvable:$true] %s288
          %291 = dma.hbm_to_vmem [thread:$0]  %s287, 192, %s289, %s276
        $region36: #{tpu_custom_call.1} parent=31 // pred_fallthru
          _
        // Predicated region
        $region37: #{tpu_custom_call.1} parent=31 // pred_check
          %p292 = pneg %p157
        $region38: #{tpu_custom_call.1} parent=31 // pred_check_branch
          %294 = sbr.rel (%p292) target = $region40
        $region39: #{tpu_custom_call.1} parent=31 // pred_region
          %s295 = sand.u32 %s27, 1
          %s296 = scalar_lea.sflag [#allocation8], %s295
          %s297 = sand.u32 %s147, 1
          %s298 = smul.addr %s297, 16
          %s299 = scalar_lea.vmem [#allocation7], %s298
          %301 = vsyncadd %s296, 0
          %s302 = smul.addr %s27, 2
          %s303 = smul.addr %s302, 8
          %s304 = scalar_lea.hbm %s5, %s303
          %s306 = sshll.u32 %s304, 4
          %s307 = int_to_ptr.hbm [resolvable:$true] %s306
          %s308 = sshll.u32 %s299, 4
          %s309 = int_to_ptr.vmem [resolvable:$true] %s308
          %311 = dma.hbm_to_vmem [thread:$0]  %s307, 256, %s309, %s296
        $region40: #{tpu_custom_call.1} parent=31 // pred_fallthru
          _
        // Predicated region
        $region41: #{tpu_custom_call.1} parent=31 // pred_check
          %p312 = pneg %p183
        $region42: #{tpu_custom_call.1} parent=31 // pred_check_branch
          %314 = sbr.rel (%p312) target = $region44
        $region43: #{tpu_custom_call.1} parent=31 // pred_region
          %s315 = sand.u32 %s27, 1
          %s316 = scalar_lea.sflag [#allocation8], %s315
          %s317 = sand.u32 %s173, 1
          %s318 = smul.addr %s317, 16
          %s319 = scalar_lea.vmem [#allocation9], %s318
          %321 = vsyncadd %s316, 0
          %s322 = smul.addr %s27, 2
          %s323 = smul.addr %s322, 8
          %s324 = scalar_lea.hbm %s6, %s323
          %s326 = sshll.u32 %s324, 4
          %s327 = int_to_ptr.hbm [resolvable:$true] %s326
          %s328 = sshll.u32 %s319, 4
          %s329 = int_to_ptr.vmem [resolvable:$true] %s328
          %331 = dma.hbm_to_vmem [thread:$0]  %s327, 256, %s329, %s316
        $region44: #{tpu_custom_call.1} parent=31 // pred_fallthru
          _
      $region32: #{tpu_custom_call.1} parent=5 // pred_fallthru
        _
      %p332 = scmp.le.s32.totalorder 1, %s27
      %p333 = scmp.lt.s32.totalorder %s27, 3
      %p334 = pnand %p332, %p333
      %p335 = pneg %p334
      // Predicated region
      $region45: #{tpu_custom_call.1} parent=5 // pred_check
        _
      $region46: #{tpu_custom_call.1} parent=5 // pred_check_branch
        %337 = sbr.rel (%p334) target = $region48
      $region47: #{tpu_custom_call.1} parent=5 // pred_region
        %s338 = ssub.s32 %s27, 1
        %s339 = sand.u32 %s40, 1
        %s340 = scalar_lea.sflag [#allocation5], %s339
        %s341 = sand.u32 %s40, 1
        %s342 = smul.addr %s341, 12
        %s343 = scalar_lea.vmem [#allocation4], %s342
        // Predicated region
        $region49: #{tpu_custom_call.1} parent=47 // pred_check
          %p344 = pneg %p53
        $region50: #{tpu_custom_call.1} parent=47 // pred_check_branch
          %346 = sbr.rel (%p344) target = $region52
        $region51: #{tpu_custom_call.1} parent=47 // pred_region
          %348 = dma.done %s340, 192
        $region52: #{tpu_custom_call.1} parent=47 // pred_fallthru
          _
        %s349 = sand.u32 %s32, 1
        %s350 = scalar_lea.sflag [#allocation8], %s349
        %s351 = sand.u32 %s150, 1
        %s352 = smul.addr %s351, 16
        %s353 = scalar_lea.vmem [#allocation7], %s352
        // Predicated region
        $region53: #{tpu_custom_call.1} parent=47 // pred_check
          %p354 = pneg %p163
        $region54: #{tpu_custom_call.1} parent=47 // pred_check_branch
          %356 = sbr.rel (%p354) target = $region56
        $region55: #{tpu_custom_call.1} parent=47 // pred_region
          %358 = dma.done %s350, 256
        $region56: #{tpu_custom_call.1} parent=47 // pred_fallthru
          _
        %s359 = sand.u32 %s32, 1
        %s360 = scalar_lea.sflag [#allocation8], %s359
        %s361 = sand.u32 %s176, 1
        %s362 = smul.addr %s361, 16
        %s363 = scalar_lea.vmem [#allocation9], %s362
        // Predicated region
        $region57: #{tpu_custom_call.1} parent=47 // pred_check
          %p364 = pneg %p189
        $region58: #{tpu_custom_call.1} parent=47 // pred_check_branch
          %366 = sbr.rel (%p364) target = $region60
        $region59: #{tpu_custom_call.1} parent=47 // pred_region
          %368 = dma.done %s360, 256
        $region60: #{tpu_custom_call.1} parent=47 // pred_fallthru
          _
        %s369 = sand.u32 %s40, 1
        %s370 = scalar_lea.sflag [#allocation5], %s369
        %s371 = sand.u32 %s40, 1
        %s372 = smul.addr %s371, 12
        %s373 = scalar_lea.vmem [#allocation4], %s372
        %p374 = pneg %p53
        %p375 = pneg %p50
        %p376 = pneg %p74
        %p377 = pneg %p71
        %p378 = pneg %p95
        %p379 = pneg %p92
        %p380 = pneg %p116
        %p381 = pneg %p113
        %p382 = pneg %p137
        %p383 = pneg %p134
        %s384 = sand.u32 %s32, 1
        %s385 = scalar_lea.sflag [#allocation8], %s384
        %s386 = sand.u32 %s150, 1
        %s387 = smul.addr %s386, 16
        %s388 = scalar_lea.vmem [#allocation7], %s387
        %p389 = pneg %p163
        %p390 = pneg %p160
        %s391 = sand.u32 %s32, 1
        %s392 = scalar_lea.sflag [#allocation8], %s391
        %s393 = sand.u32 %s176, 1
        %s394 = smul.addr %s393, 16
        %s395 = scalar_lea.vmem [#allocation9], %s394
        %p396 = pneg %p189
        %p397 = pneg %p186
        %p398 = pneg %p215
        %p399 = pneg %p212
        %s400 = sand.u32 %s202, 1
        %s401 = scalar_lea.sflag [#allocation6], %s400
        %s402 = sand.u32 %s202, 1
        %s403 = smul.addr %s402, 16
        %s404 = scalar_lea.vmem [#allocation10], %s403
        %p405 = pneg %p241
        %p406 = pneg %p238
        %s407 = sand.u32 %s228, 1
        %s408 = scalar_lea.sflag [#allocation12], %s407
        %s409 = sand.u32 %s228, 1
        %s410 = smul.addr %s409, 16
        %s411 = scalar_lea.vmem [#allocation11], %s410
        %v412 = vld [vmem:[%s1] sm:$0xff]
        %v413 = vld [vmem:[%s2] sm:$0xff]
        %v414 = vld [vmem:[%s3] sm:$0xff]
        %v415 = vld [vmem:[%s4] sm:$0xff]
        %v416 = vld [vmem:[%s343] sm:$0xff]
        %v417 = vld [vmem:[%s343 + $0x8] sm:$0xf]
        %420 = vst [vmem:[#allocation1] ss:$2 sm:$0xff] %v416
        %s421 = scalar_lea.vmem [#allocation1], 16
        %422 = vst [vmem:[%s421] ss:$2 sm:$0xff] %v417
        %v423 = vld.sshfl [vmem:[#allocation1] sm:$0xff pattern:$0x75316420]
        %v424 = vld.sshfl [vmem:[#allocation1 + $0x8] sm:$0xff pattern:$0x75316420]
        %v425 = vld.sshfl [vmem:[#allocation1 + $0x10] sm:$0xff pattern:$0x75316420]
        %429 = vst [vmem:[#allocation2] sm:$0xf] %v423
        %430 = vst [vmem:[#allocation2 + $0x8] sm:$0xf] %v424
        %vm431 = vcmask 257024
        %432 = vst.msk [vmem:[#allocation2 + $0x10] sm:$0xf] %vm431, %v425
        %s433 = scalar_lea.vmem [#allocation1], 1
        %434 = vst [vmem:[%s433] ss:$2 sm:$0xff] %v416
        %s435 = scalar_lea.vmem [#allocation1], 17
        %436 = vst [vmem:[%s435] ss:$2 sm:$0xff] %v417
        %v437 = vld.sshfl [vmem:[#allocation1] sm:$0xff pattern:$0x75316420]
        %v438 = vld.sshfl [vmem:[#allocation1 + $0x8] sm:$0xff pattern:$0x75316420]
        %v439 = vld.sshfl [vmem:[#allocation1 + $0x10] sm:$0xff pattern:$0x75316420]
        %440 = vrot.lane.b32.xlu0 %v437, 127
        %v441 = vpop.permute.xlu0 %440
        %442 = vrot.lane.b32.xlu0 %v438, 127
        %v443 = vpop.permute.xlu0 %442
        %444 = vrot.lane.b32.xlu0 %v439, 127
        %v445 = vpop.permute.xlu0 %444
        %vm446 = vcmask 1039360
        %v447 = vsel %vm446, %v441, %v443
        %v448 = vsel %vm446, %v443, %v445
        %452 = vst [vmem:[#allocation2] sm:$0xf0] %v447
        %453 = vst [vmem:[#allocation2 + $0x8] sm:$0xf0] %v448
        %vm454 = vcmask 261124
        %455 = vst.msk [vmem:[#allocation2 + $0x10] sm:$0xf0] %vm454, %v445
        %456 = vst [vmem:[#allocation1] ss:$2 sm:$0xff] %v416
        %s457 = scalar_lea.vmem [#allocation1], 16
        %458 = vst [vmem:[%s457] ss:$2 sm:$0xff] %v417
        %v459 = vld.sshfl [vmem:[#allocation1] sm:$0xff pattern:$0x75316420]
        %v460 = vld.sshfl [vmem:[#allocation1 + $0x8] sm:$0xff pattern:$0x75316420]
        %v461 = vld.sshfl [vmem:[#allocation1 + $0x10] sm:$0xff pattern:$0x75316420]
        %462 = vrot.lane.b32.xlu0 %v459, 126
        %v463 = vpop.permute.xlu0 %462
        %464 = vrot.lane.b32.xlu0 %v460, 126
        %v465 = vpop.permute.xlu0 %464
        %466 = vrot.lane.b32.xlu0 %v461, 126
        %v467 = vpop.permute.xlu0 %466
        %vm468 = vcmask 1031168
        %v469 = vsel %vm468, %v463, %v465
        %v470 = vsel %vm468, %v465, %v467
        %474 = vst [vmem:[#allocation2 + $0x18] sm:$0xf] %v469
        %475 = vst [vmem:[#allocation2 + $0x20] sm:$0xf] %v470
        %476 = vst.msk [vmem:[#allocation2 + $0x28] sm:$0xf] %vm431, %v467
        %s477 = scalar_lea.vmem [#allocation1], 1
        %478 = vst [vmem:[%s477] ss:$2 sm:$0xff] %v416
        %s479 = scalar_lea.vmem [#allocation1], 17
        %480 = vst [vmem:[%s479] ss:$2 sm:$0xff] %v417
        %v481 = vld.sshfl [vmem:[#allocation1] sm:$0xff pattern:$0x75316420]
        %v482 = vld.sshfl [vmem:[#allocation1 + $0x8] sm:$0xff pattern:$0x75316420]
        %v483 = vld.sshfl [vmem:[#allocation1 + $0x10] sm:$0xff pattern:$0x75316420]
        %484 = vrot.lane.b32.xlu0 %v481, 110
        %v485 = vpop.permute.xlu0 %484
        %486 = vrot.lane.b32.xlu0 %v482, 110
        %v487 = vpop.permute.xlu0 %486
        %488 = vrot.lane.b32.xlu0 %v483, 110
        %v489 = vpop.permute.xlu0 %488
        %vm490 = vcmask 900096
        %v491 = vsel %vm490, %v485, %v487
        %v492 = vsel %vm490, %v487, %v489
        %496 = vst [vmem:[#allocation2 + $0x18] sm:$0xf0] %v491
        %497 = vst [vmem:[#allocation2 + $0x20] sm:$0xf0] %v492
        %498 = vst.msk [vmem:[#allocation2 + $0x28] sm:$0xf0] %vm454, %v489
        %499 = vst [vmem:[#allocation1] ss:$2 sm:$0xff] %v416
        %s500 = scalar_lea.vmem [#allocation1], 16
        %501 = vst [vmem:[%s500] ss:$2 sm:$0xff] %v417
        %v502 = vld.sshfl [vmem:[#allocation1] sm:$0xff pattern:$0x75316420]
        %v503 = vld.sshfl [vmem:[#allocation1 + $0x8] sm:$0xff pattern:$0x75316420]
        %v504 = vld.sshfl [vmem:[#allocation1 + $0x10] sm:$0xff pattern:$0x75316420]
        %505 = vrot.lane.b32.xlu0 %v502, 109
        %v506 = vpop.permute.xlu0 %505
        %507 = vrot.lane.b32.xlu0 %v503, 109
        %v508 = vpop.permute.xlu0 %507
        %509 = vrot.lane.b32.xlu0 %v504, 109
        %v510 = vpop.permute.xlu0 %509
        %vm511 = vcmask 891904
        %v512 = vsel %vm511, %v506, %v508
        %v513 = vsel %vm511, %v508, %v510
        %517 = vst [vmem:[#allocation2 + $0x30] sm:$0xf] %v512
        %518 = vst [vmem:[#allocation2 + $0x38] sm:$0xf] %v513
        %519 = vst.msk [vmem:[#allocation2 + $0x40] sm:$0xf] %vm431, %v510
        %s520 = scalar_lea.vmem [#allocation1], 1
        %521 = vst [vmem:[%s520] ss:$2 sm:$0xff] %v416
        %s522 = scalar_lea.vmem [#allocation1], 17
        %523 = vst [vmem:[%s522] ss:$2 sm:$0xff] %v417
        %v524 = vld.sshfl [vmem:[#allocation1] sm:$0xff pattern:$0x75316420]
        %v525 = vld.sshfl [vmem:[#allocation1 + $0x8] sm:$0xff pattern:$0x75316420]
        %v526 = vld.sshfl [vmem:[#allocation1 + $0x10] sm:$0xff pattern:$0x75316420]
        %527 = vrot.lane.b32.xlu0 %v524, 108
        %v528 = vpop.permute.xlu0 %527
        %529 = vrot.lane.b32.xlu0 %v525, 108
        %v530 = vpop.permute.xlu0 %529
        %531 = vrot.lane.b32.xlu0 %v526, 108
        %v532 = vpop.permute.xlu0 %531
        %vm533 = vcmask 883712
        %v534 = vsel %vm533, %v528, %v530
        %v535 = vsel %vm533, %v530, %v532
        %539 = vst [vmem:[#allocation2 + $0x30] sm:$0xf0] %v534
        %540 = vst [vmem:[#allocation2 + $0x38] sm:$0xf0] %v535
        %541 = vst.msk [vmem:[#allocation2 + $0x40] sm:$0xf0] %vm454, %v532
        %542 = vst [vmem:[#allocation1] ss:$2 sm:$0xff] %v416
        %s543 = scalar_lea.vmem [#allocation1], 16
        %544 = vst [vmem:[%s543] ss:$2 sm:$0xff] %v417
        %v545 = vld.sshfl [vmem:[#allocation1] sm:$0xff pattern:$0x75316420]
        %v546 = vld.sshfl [vmem:[#allocation1 + $0x8] sm:$0xff pattern:$0x75316420]
        %v547 = vld.sshfl [vmem:[#allocation1 + $0x10] sm:$0xff pattern:$0x75316420]
        %548 = vrot.lane.b32.xlu0 %v545, 92
        %v549 = vpop.permute.xlu0 %548
        %550 = vrot.lane.b32.xlu0 %v546, 92
        %v551 = vpop.permute.xlu0 %550
        %552 = vrot.lane.b32.xlu0 %v547, 92
        %v553 = vpop.permute.xlu0 %552
        %vm554 = vcmask 752640
        %v555 = vsel %vm554, %v549, %v551
        %v556 = vsel %vm554, %v551, %v553
        %560 = vst [vmem:[#allocation2 + $0x48] sm:$0xf] %v555
        %561 = vst [vmem:[#allocation2 + $0x50] sm:$0xf] %v556
        %562 = vst.msk [vmem:[#allocation2 + $0x58] sm:$0xf] %vm431, %v553
        %s563 = scalar_lea.vmem [#allocation1], 1
        %564 = vst [vmem:[%s563] ss:$2 sm:$0xff] %v416
        %s565 = scalar_lea.vmem [#allocation1], 17
        %566 = vst [vmem:[%s565] ss:$2 sm:$0xff] %v417
        %v567 = vld.sshfl [vmem:[#allocation1] sm:$0xff pattern:$0x75316420]
        %v568 = vld.sshfl [vmem:[#allocation1 + $0x8] sm:$0xff pattern:$0x75316420]
        %v569 = vld.sshfl [vmem:[#allocation1 + $0x10] sm:$0xff pattern:$0x75316420]
        %570 = vrot.lane.b32.xlu0 %v567, 91
        %v571 = vpop.permute.xlu0 %570
        %572 = vrot.lane.b32.xlu0 %v568, 91
        %v573 = vpop.permute.xlu0 %572
        %574 = vrot.lane.b32.xlu0 %v569, 91
        %v575 = vpop.permute.xlu0 %574
        %vm576 = vcmask 744448
        %v577 = vsel %vm576, %v571, %v573
        %v578 = vsel %vm576, %v573, %v575
        %582 = vst [vmem:[#allocation2 + $0x48] sm:$0xf0] %v577
        %583 = vst [vmem:[#allocation2 + $0x50] sm:$0xf0] %v578
        %584 = vst.msk [vmem:[#allocation2 + $0x58] sm:$0xf0] %vm454, %v575
        %585 = vst [vmem:[#allocation1] ss:$2 sm:$0xff] %v416
        %s586 = scalar_lea.vmem [#allocation1], 16
        %587 = vst [vmem:[%s586] ss:$2 sm:$0xff] %v417
        %v588 = vld.sshfl [vmem:[#allocation1] sm:$0xff pattern:$0x75316420]
        %v589 = vld.sshfl [vmem:[#allocation1 + $0x8] sm:$0xff pattern:$0x75316420]
        %v590 = vld.sshfl [vmem:[#allocation1 + $0x10] sm:$0xff pattern:$0x75316420]
        %591 = vrot.lane.b32.xlu0 %v588, 90
        %v592 = vpop.permute.xlu0 %591
        %593 = vrot.lane.b32.xlu0 %v589, 90
        %v594 = vpop.permute.xlu0 %593
        %595 = vrot.lane.b32.xlu0 %v590, 90
        %v596 = vpop.permute.xlu0 %595
        %vm597 = vcmask 736256
        %v598 = vsel %vm597, %v592, %v594
        %v599 = vsel %vm597, %v594, %v596
        %603 = vst [vmem:[#allocation2 + $0x60] sm:$0xf] %v598
        %604 = vst [vmem:[#allocation2 + $0x68] sm:$0xf] %v599
        %605 = vst.msk [vmem:[#allocation2 + $0x70] sm:$0xf] %vm431, %v596
        %v606 = vld [vmem:[#allocation2] sm:$0xff]
        %v607 = vld [vmem:[#allocation2 + $0x8] sm:$0xff]
        %v608 = vld [vmem:[#allocation2 + $0x10] sm:$0xff]
        %v609 = vld [vmem:[#allocation2 + $0x18] sm:$0xff]
        %v610 = vld [vmem:[#allocation2 + $0x20] sm:$0xff]
        %v611 = vld [vmem:[#allocation2 + $0x28] sm:$0xff]
        %v612 = vld [vmem:[#allocation2 + $0x30] sm:$0xff]
        %v613 = vld [vmem:[#allocation2 + $0x38] sm:$0xff]
        %v614 = vld [vmem:[#allocation2 + $0x40] sm:$0xff]
        %v615 = vld [vmem:[#allocation2 + $0x48] sm:$0xff]
        %v616 = vld [vmem:[#allocation2 + $0x50] sm:$0xff]
        %v617 = vld [vmem:[#allocation2 + $0x58] sm:$0xff]
        %v618 = vld [vmem:[#allocation2 + $0x60] sm:$0xf]
        %v619 = vld [vmem:[#allocation2 + $0x68] sm:$0xf]
        %v620 = vld [vmem:[#allocation2 + $0x70] sm:$0xf]
        %vm621 = vcmask 293888
        %v623 = vsel %vm621, %v412, 0
        %vm625 = vcmask 1043456
        %v627 = vsel %vm625, %v618, 0
        %v630 = vsel %vm625, %v619, 0
        %v633 = vsel %vm625, %v620, 0
        %635 = vmatpush.msra.mxu0 0.0
        %636 = vmatpush.msra.mxu0 0.0
        %637 = vmatpush.msra.mxu0 0.0
        %638 = vmatpush.msra.mxu0 0.0
        %639 = vmatpush.msra.mxu0 0.0
        %640 = vmatpush.msra.mxu0 0.0
        %641 = vmatpush.msra.mxu0 0.0
        %642 = vmatpush.msra.mxu0 0.0
        %643 = vmatpush.msra.mxu0 0.0
        %644 = vmatpush.msra.mxu0 0.0
        %645 = vmatpush.msra.mxu0 0.0
        %646 = vmatpush.msra.mxu0 %v627
        %647 = vmatpush.msra.mxu0 %v615
        %648 = vmatpush.msra.mxu0 %v612
        %649 = vmatpush.msra.mxu0 %v609
        %650 = vmatpush.msra.mxu0 %v606
        %651 = vmatmul.f32.gmra.mxu0 %v623
        %v652 = vpop.f32.mrf.mxu0
        %v653 = vadd.f32 0.0, %v652
        %654 = vdwg.mxu0
        %655 = vmatpush.msra.mxu0 0.0
        %656 = vmatpush.msra.mxu0 0.0
        %657 = vmatpush.msra.mxu0 0.0
        %658 = vmatpush.msra.mxu0 0.0
        %659 = vmatpush.msra.mxu0 0.0
        %660 = vmatpush.msra.mxu0 0.0
        %661 = vmatpush.msra.mxu0 0.0
        %662 = vmatpush.msra.mxu0 0.0
        %663 = vmatpush.msra.mxu0 0.0
        %664 = vmatpush.msra.mxu0 0.0
        %665 = vmatpush.msra.mxu0 0.0
        %666 = vmatpush.msra.mxu0 %v630
        %667 = vmatpush.msra.mxu0 %v616
        %668 = vmatpush.msra.mxu0 %v613
        %669 = vmatpush.msra.mxu0 %v610
        %670 = vmatpush.msra.mxu0 %v607
        %671 = vmatmul.f32.gmra.mxu0 %v623
        %v672 = vpop.f32.mrf.mxu0
        %v673 = vadd.f32 0.0, %v672
        %674 = vdwg.mxu0
        %675 = vmatpush.msra.mxu0 0.0
        %676 = vmatpush.msra.mxu0 0.0
        %677 = vmatpush.msra.mxu0 0.0
        %678 = vmatpush.msra.mxu0 0.0
        %679 = vmatpush.msra.mxu0 0.0
        %680 = vmatpush.msra.mxu0 0.0
        %681 = vmatpush.msra.mxu0 0.0
        %682 = vmatpush.msra.mxu0 0.0
        %683 = vmatpush.msra.mxu0 0.0
        %684 = vmatpush.msra.mxu0 0.0
        %685 = vmatpush.msra.mxu0 0.0
        %686 = vmatpush.msra.mxu0 %v633
        %687 = vmatpush.msra.mxu0 %v617
        %688 = vmatpush.msra.mxu0 %v614
        %689 = vmatpush.msra.mxu0 %v611
        %690 = vmatpush.msra.mxu0 %v608
        %691 = vmatmul.f32.gmra.mxu0 %v623
        %v692 = vpop.f32.mrf.mxu0
        %v693 = vadd.f32 0.0, %v692
        %694 = vdwg.mxu0
        %vm695 = vcmask 130048
        %696 = vst.msk [vmem:[#allocation3] sm:$0xff] %vm695, %v653
        %698 = vrot.lane.b32.xlu0 %v653, 126
        %v699 = vpop.permute.xlu0 %698
        %vm701 = vcmask 261248
        %702 = vst.msk [vmem:[#allocation3] sm:$0xff] %vm701, %v699
        %703 = vrot.lane.b32.xlu0 %v653, 124
        %v704 = vpop.permute.xlu0 %703
        %vm706 = vcmask 392448
        %707 = vst.msk [vmem:[#allocation3] sm:$0xff] %vm706, %v704
        %708 = vrot.lane.b32.xlu0 %v653, 122
        %v709 = vpop.permute.xlu0 %708
        %vm711 = vcmask 523648
        %712 = vst.msk [vmem:[#allocation3] sm:$0xff] %vm711, %v709
        %713 = vrot.lane.b32.xlu0 %v653, 120
        %v714 = vpop.permute.xlu0 %713
        %vm716 = vcmask 654848
        %717 = vst.msk [vmem:[#allocation3] sm:$0xff] %vm716, %v714
        %718 = vrot.lane.b32.xlu0 %v653, 118
        %v719 = vpop.permute.xlu0 %718
        %vm721 = vcmask 786048
        %722 = vst.msk [vmem:[#allocation3] sm:$0xff] %vm721, %v719
        %723 = vrot.lane.b32.xlu0 %v653, 116
        %v724 = vpop.permute.xlu0 %723
        %vm726 = vcmask 917248
        %727 = vst.msk [vmem:[#allocation3] sm:$0xff] %vm726, %v724
        %729 = vrot.lane.b32.xlu0 %v653, 114
        %v730 = vpop.permute.xlu0 %729
        %731 = vrot.lane.b32.xlu0 %v673, 114
        %v732 = vpop.permute.xlu0 %731
        %vm733 = vcmask 932864
        %v734 = vsel %vm733, %v730, %v732
        %vm736 = vcmask 1048448
        %737 = vst.msk [vmem:[#allocation3] sm:$0xff] %vm736, %v734
        %738 = vrot.lane.b32.xlu0 %v673, 112
        %v739 = vpop.permute.xlu0 %738
        %741 = vst.msk [vmem:[#allocation3 + $0x8] sm:$0xff] %vm695, %v739
        %742 = vrot.lane.b32.xlu0 %v673, 110
        %v743 = vpop.permute.xlu0 %742
        %745 = vst.msk [vmem:[#allocation3 + $0x8] sm:$0xff] %vm701, %v743
        %746 = vrot.lane.b32.xlu0 %v673, 108
        %v747 = vpop.permute.xlu0 %746
        %749 = vst.msk [vmem:[#allocation3 + $0x8] sm:$0xff] %vm706, %v747
        %750 = vrot.lane.b32.xlu0 %v673, 106
        %v751 = vpop.permute.xlu0 %750
        %753 = vst.msk [vmem:[#allocation3 + $0x8] sm:$0xff] %vm711, %v751
        %754 = vrot.lane.b32.xlu0 %v673, 104
        %v755 = vpop.permute.xlu0 %754
        %757 = vst.msk [vmem:[#allocation3 + $0x8] sm:$0xff] %vm716, %v755
        %758 = vrot.lane.b32.xlu0 %v673, 102
        %v759 = vpop.permute.xlu0 %758
        %761 = vst.msk [vmem:[#allocation3 + $0x8] sm:$0xff] %vm721, %v759
        %763 = vrot.lane.b32.xlu0 %v673, 100
        %v764 = vpop.permute.xlu0 %763
        %765 = vrot.lane.b32.xlu0 %v693, 100
        %v766 = vpop.permute.xlu0 %765
        %vm767 = vcmask 818176
        %v768 = vsel %vm767, %v764, %v766
        %770 = vst.msk [vmem:[#allocation3 + $0x8] sm:$0xff] %vm726, %v768
        %771 = vrot.lane.b32.xlu0 %v693, 98
        %v772 = vpop.permute.xlu0 %771
        %774 = vst.msk [vmem:[#allocation3 + $0x8] sm:$0xff] %vm736, %v772
        %v775 = vld [vmem:[#allocation3] sm:$0xff]
        %v776 = vld [vmem:[#allocation3 + $0x8] sm:$0xff]
        %778 = vset.pattern.permute.xlu0 0
        %779 = vperm.xlu0 %778, %v413
        %v780 = vpop.permute.xlu0 %779
        %v782 = vadd.f32 %v775, %v780
        %v783 = vadd.f32 %v776, %v780
        %v784 = vld [vmem:[%s353] sm:$0xff]
        %v785 = vld [vmem:[%s353 + $0x8] sm:$0xff]
        %v786 = vld [vmem:[%s363] sm:$0xff]
        %v787 = vld [vmem:[%s363 + $0x8] sm:$0xff]
        %789 = vset.pattern.permute.xlu0 0
        %790 = vperm.xlu0 %789, %v414
        %v791 = vpop.permute.xlu0 %790
        %v793 = vmul.f32 %v784, %v791
        %v794 = vmul.f32 %v785, %v791
        %v795 = vsub.f32 1.0, %v786
        %v796 = vsub.f32 1.0, %v787
        %v797 = vmul.f32 %v793, %v795
        %v798 = vmul.f32 %v794, %v796
        %v799 = vadd.f32 %v797, %v782
        %v800 = vadd.f32 %v798, %v783
        %802 = vset.pattern.permute.xlu0 0
        %803 = vperm.xlu0 %802, %v415
        %v804 = vpop.permute.xlu0 %803
        %vm806 = vcmp.gt.f32.partialorder %v799, %v804
        %vm807 = vcmp.gt.f32.partialorder %v800, %v804
        %v808 = vsel %vm806, 1, 0
        %v809 = vsel %vm807, 1, 0
        %v810 = vcvt.s32.f32 %v808
        %v811 = vcvt.s32.f32 %v809
        %812 = vst [vmem:[%s404] sm:$0xff] %v799
        %813 = vst [vmem:[%s404 + $0x8] sm:$0xff] %v800
        %814 = vst [vmem:[%s411] sm:$0xff] %v810
        %815 = vst [vmem:[%s411 + $0x8] sm:$0xff] %v811
        %s816 = sand.u32 %s202, 1
        %s817 = scalar_lea.sflag [#allocation6], %s816
        %s818 = sand.u32 %s202, 1
        %s819 = smul.addr %s818, 16
        %s820 = scalar_lea.vmem [#allocation10], %s819
        %s821 = sand.u32 %s228, 1
        %s822 = scalar_lea.sflag [#allocation12], %s821
        %s823 = sand.u32 %s228, 1
        %s824 = smul.addr %s823, 16
        %s825 = scalar_lea.vmem [#allocation11], %s824
        // Predicated region
        $region61: #{tpu_custom_call.1} parent=47 // pred_check
          %p826 = pneg %p212
        $region62: #{tpu_custom_call.1} parent=47 // pred_check_branch
          %828 = sbr.rel (%p826) target = $region64
        $region63: #{tpu_custom_call.1} parent=47 // pred_region
          %830 = vsyncadd %s817, 0
          %s831 = smul.addr %s32, 2
          %s832 = smul.addr %s831, 8
          %s833 = scalar_lea.hbm %s7, %s832
          %s835 = sshll.u32 %s820, 4
          %s836 = int_to_ptr.vmem [resolvable:$true] %s835
          %s837 = sshll.u32 %s833, 4
          %s838 = int_to_ptr.hbm [resolvable:$true] %s837
          %840 = dma.vmem_to_hbm [thread:$0]  %s836, 256, %s838, %s817
        $region64: #{tpu_custom_call.1} parent=47 // pred_fallthru
          _
        // Predicated region
        $region65: #{tpu_custom_call.1} parent=47 // pred_check
          %p841 = pneg %p238
        $region66: #{tpu_custom_call.1} parent=47 // pred_check_branch
          %843 = sbr.rel (%p841) target = $region68
        $region67: #{tpu_custom_call.1} parent=47 // pred_region
          %845 = vsyncadd %s822, 0
          %s846 = smul.addr %s32, 2
          %s847 = smul.addr %s846, 8
          %s848 = scalar_lea.hbm %s8, %s847
          %s850 = sshll.u32 %s825, 4
          %s851 = int_to_ptr.vmem [resolvable:$true] %s850
          %s852 = sshll.u32 %s848, 4
          %s853 = int_to_ptr.hbm [resolvable:$true] %s852
          %855 = dma.vmem_to_hbm [thread:$0]  %s851, 256, %s853, %s822
        $region68: #{tpu_custom_call.1} parent=47 // pred_fallthru
          _
      $region48: #{tpu_custom_call.1} parent=5 // pred_fallthru
        _
      %p856 = scmp.le.s32.totalorder 2, %s27
      // Predicated region
      $region69: #{tpu_custom_call.1} parent=5 // pred_check
        %p857 = pneg %p856
      $region70: #{tpu_custom_call.1} parent=5 // pred_check_branch
        %859 = sbr.rel (%p857) target = $region72
      $region71: #{tpu_custom_call.1} parent=5 // pred_region
        %s860 = ssub.s32 %s27, 2
        // Predicated region
        $region73: #{tpu_custom_call.1} parent=71 // pred_check
          %p861 = pneg %p218
        $region74: #{tpu_custom_call.1} parent=71 // pred_check_branch
          %863 = sbr.rel (%p861) target = $region76
        $region75: #{tpu_custom_call.1} parent=71 // pred_region
          %s864 = sand.u32 %s203, 1
          %s865 = scalar_lea.sflag [#allocation6], %s864
          %s866 = sand.u32 %s203, 1
          %s867 = smul.addr %s866, 16
          %s868 = scalar_lea.vmem [#allocation10], %s867
          %870 = dma.done %s865, 256
        $region76: #{tpu_custom_call.1} parent=71 // pred_fallthru
          _
        // Predicated region
        $region77: #{tpu_custom_call.1} parent=71 // pred_check
          %p871 = pneg %p244
        $region78: #{tpu_custom_call.1} parent=71 // pred_check_branch
          %873 = sbr.rel (%p871) target = $region80
        $region79: #{tpu_custom_call.1} parent=71 // pred_region
          %s874 = sand.u32 %s229, 1
          %s875 = scalar_lea.sflag [#allocation12], %s874
          %s876 = sand.u32 %s229, 1
          %s877 = smul.addr %s876, 16
          %s878 = scalar_lea.vmem [#allocation11], %s877
          %880 = dma.done %s875, 256
        $region80: #{tpu_custom_call.1} parent=71 // pred_fallthru
          _
      $region72: #{tpu_custom_call.1} parent=5 // pred_fallthru
        _
    $region6: #{tpu_custom_call.1} parent=1 // loop_footer
      %s31 = sadd.s32 1, %s27
    $region7: #{tpu_custom_call.1} parent=1 // loop_footer_branch
      %26 = sbr.rel target = $region3
    $region8: #{tpu_custom_call.1} parent=1 // loop_exit
      _
    %881 = vsyncpa [#allocation5], 1
    %s882 = scalar_lea.sflag [#allocation5], 1
    %883 = vsyncpa %s882, 1
    %884 = vsyncpa [#allocation8], 1
    %s885 = scalar_lea.sflag [#allocation8], 1
    %886 = vsyncpa %s885, 1
    %887 = vsyncpa [#allocation6], 1
    %s888 = scalar_lea.sflag [#allocation6], 1
    %889 = vsyncpa %s888, 1
    %890 = vsyncpa [#allocation12], 1
    %s891 = scalar_lea.sflag [#allocation12], 1
    %892 = vsyncpa %s891, 1

</llo_original>
